<compile_context>
chip_gen: v5e
topology: v5e:2x2
jax: 0.10.0
libtpu: 0.0.40
codegen_flags: <defaults>
</compile_context>

<pallas_src>
import jax
import jax.numpy as jnp
from jax.experimental import pallas as pl
from jax.experimental.pallas import tpu as pltpu


LANE = 128     # TPU lane width (last-dim vreg width)
SUBLANE = 16   # round batch tiles to this (covers f32's 8 and bf16's 16)


def _round_up(x, m):
    return (x + m - 1) // m * m


# ----------------------------- Pallas kernel ------------------------------ #
def mlp_reg_kernel(x_ref, w1_ref, b1_ref, w2_ref, b2_ref, w3_ref, b3_ref,
                   out_ref):
    """Fused encoder (Linear->ReLU->Linear) + regression Linear.

    x_ref  : (TB, D_in_p)        input batch tile (padded, lane-dense)
    w1_ref : (D_in_p, H_p)       encoder layer-1 weight ([in, out], padded)
    b1_ref : (1, H_p)            f32 bias
    w2_ref : (H_p, D_lat_p)      encoder layer-2 weight
    b2_ref : (1, D_lat_p)
    w3_ref : (D_lat_p, D_out_p)  regression head weight
    b3_ref : (1, D_out_p)
    out_ref: (TB, D_out_p)       lane-dense output tile
    """
    x = x_ref[...]

    # encoder layer 1 + ReLU (f32 accumulation on the MXU)
    h = jnp.dot(x, w1_ref[...], preferred_element_type=jnp.float32)
    h = jnp.maximum(h + b1_ref[...], 0.0)

    # encoder layer 2 (latent z)
    z = jnp.dot(h.astype(w2_ref.dtype), w2_ref[...],
                preferred_element_type=jnp.float32)
    z = z + b2_ref[...]

    # regression head: pred = z @ W3 + b3
    pred = jnp.dot(z.astype(w3_ref.dtype), w3_ref[...],
                   preferred_element_type=jnp.float32)
    pred = pred + b3_ref[...]

    out_ref[...] = pred.astype(out_ref.dtype)


# ------------------------------ Host wrapper ------------------------------ #
def mlp_reg_forward(x, params, *, compute_dtype=None, tile_b=None):
    """Fused MLPReg forward pass with Pallas.

    x      : [B, D_in]
    params : dict with w1 [H, D_in], b1 [H], w2 [D_lat, H], b2 [D_lat],
             w3 [D_out, D_lat], b3 [D_out]   (PyTorch [out, in] layout)
    compute_dtype : dtype for the matmul operands (e.g. jnp.bfloat16);
                    defaults to x.dtype.  Accumulation is always f32.
    """
    x = jnp.asarray(x)
    B, d_in = x.shape
    w1, b1 = params["w1"], params["b1"]
    w2, b2 = params["w2"], params["b2"]
    w3, b3 = params["w3"], params["b3"]

    hidden = w1.shape[0]
    d_lat = w2.shape[0]
    d_out = w3.shape[0]

    cdt = jnp.dtype(x.dtype if compute_dtype is None else compute_dtype)

    # ---- padded (lane-dense) feature dims ----
    d_in_p = _round_up(d_in, LANE)
    h_p = _round_up(hidden, LANE)
    d_lat_p = _round_up(d_lat, LANE)
    d_out_p = _round_up(d_out, LANE)

    # ---- batch tile: one big step for small B, 512-row tiles otherwise ----
    # (For very large B this keeps the grid >= several steps, letting the
    #  "parallel" batch axis shard across v7x's 2 TensorCores; on v5e/v6e a
    #  single TC just loops with negligible per-step overhead.)
    if tile_b is None:
        tile_b = B if B <= 1024 else 512
    tile_b = _round_up(max(int(tile_b), 1), SUBLANE)
    B_p = _round_up(B, tile_b)

    def pad2(a, rows, cols):
        a = jnp.asarray(a)
        return jnp.pad(a, ((0, rows - a.shape[0]), (0, cols - a.shape[1])))

    # Glue: PyTorch [out, in] weights -> [in, out], zero-padded & lane-dense.
    w1t = pad2(jnp.asarray(w1).T, d_in_p, h_p).astype(cdt)
    w2t = pad2(jnp.asarray(w2).T, h_p, d_lat_p).astype(cdt)
    w3t = pad2(jnp.asarray(w3).T, d_lat_p, d_out_p).astype(cdt)
    b1r = pad2(jnp.asarray(b1).reshape(1, -1), 1, h_p).astype(jnp.float32)
    b2r = pad2(jnp.asarray(b2).reshape(1, -1), 1, d_lat_p).astype(jnp.float32)
    b3r = pad2(jnp.asarray(b3).reshape(1, -1), 1, d_out_p).astype(jnp.float32)
    x_p = pad2(x, B_p, d_in_p).astype(cdt)

    grid = (B_p // tile_b,)

    itemsize = cdt.itemsize
    flops = 2 * B_p * (d_in_p * h_p + h_p * d_lat_p + d_lat_p * d_out_p)
    bytes_accessed = (
        B_p * d_in_p * itemsize
        + (d_in_p * h_p + h_p * d_lat_p + d_lat_p * d_out_p) * itemsize
        + (h_p + d_lat_p + d_out_p) * 4
        + B_p * d_out_p * jnp.dtype(x.dtype).itemsize
    )

    out_p = pl.pallas_call(
        mlp_reg_kernel,
        out_shape=jax.ShapeDtypeStruct((B_p, d_out_p), x.dtype),
        grid_spec=pltpu.PrefetchScalarGridSpec(
            num_scalar_prefetch=0,
            grid=grid,
            in_specs=[
                pl.BlockSpec((tile_b, d_in_p), lambda i: (i, 0)),   # x tile
                pl.BlockSpec((d_in_p, h_p), lambda i: (0, 0)),      # w1
                pl.BlockSpec((1, h_p), lambda i: (0, 0)),           # b1
                pl.BlockSpec((h_p, d_lat_p), lambda i: (0, 0)),     # w2
                pl.BlockSpec((1, d_lat_p), lambda i: (0, 0)),       # b2
                pl.BlockSpec((d_lat_p, d_out_p), lambda i: (0, 0)), # w3
                pl.BlockSpec((1, d_out_p), lambda i: (0, 0)),       # b3
            ],
            out_specs=pl.BlockSpec((tile_b, d_out_p), lambda i: (i, 0)),
        ),
        compiler_params=pltpu.CompilerParams(
            dimension_semantics=("parallel",)),
        cost_estimate=pl.CostEstimate(
            flops=flops, transcendentals=0, bytes_accessed=bytes_accessed),
    )(x_p, w1t, b1r, w2t, b2r, w3t, b3r)

    # Strip batch and output-channel padding (pure slicing, no compute).
    return out_p[:B, :d_out]


# Pure-JAX reference of the same forward (for a sanity check).
def mlp_reg_ref(x, params):
    h = jnp.maximum(x @ params["w1"].T + params["b1"], 0.0)
    z = h @ params["w2"].T + params["b2"]
    return z @ params["w3"].T + params["b3"]


if __name__ == "__main__":
    # Small shapes consistent with the module's forward:
    #   x: [B, input_dim] -> z: [B, latent] -> pred: [B, output_dim]
    # B deliberately not a multiple of 8 to exercise the batch-padding path.
    B, D_IN, HIDDEN, D_LAT, D_OUT = 200, 32, 64, 16, 4

    key = jax.random.PRNGKey(0)
    kx, k1, k2, k3, k4, k5, k6 = jax.random.split(key, 7)

    x = jax.random.normal(kx, (B, D_IN), dtype=jnp.float32)

    # Deterministic synthetic parameters (PyTorch [out, in] layout).
    params = {
        "w1": jax.random.normal(k1, (HIDDEN, D_IN), jnp.float32) * 0.1,
        "b1": jax.random.normal(k2, (HIDDEN,), jnp.float32) * 0.1,
        "w2": jax.random.normal(k3, (D_LAT, HIDDEN), jnp.float32) * 0.1,
        "b2": jax.random.normal(k4, (D_LAT,), jnp.float32) * 0.1,
        "w3": jax.random.normal(k5, (D_OUT, D_LAT), jnp.float32) * 0.1,
        "b3": jax.random.normal(k6, (D_OUT,), jnp.float32) * 0.1,
    }

    pred = mlp_reg_forward(x, params)          # f32 operands, single grid step
    pred = jax.block_until_ready(pred)

    ref = mlp_reg_ref(x, params)
    assert pred.shape == (B, D_OUT)
    assert jnp.allclose(pred, ref, atol=1e-4, rtol=1e-4), "mismatch vs reference"

    print("KERNEL_OK")
</pallas_src>

<mosaic_0001>
module attributes {stable_mosaic.version = 11 : i64} {
  func.func @mlp_reg_kernel(%arg0: i32, %arg1: memref<208x128xf32, #tpu.memory_space<vmem>>, %arg2: memref<128x128xf32, #tpu.memory_space<vmem>>, %arg3: memref<1x128xf32, #tpu.memory_space<vmem>>, %arg4: memref<128x128xf32, #tpu.memory_space<vmem>>, %arg5: memref<1x128xf32, #tpu.memory_space<vmem>>, %arg6: memref<128x128xf32, #tpu.memory_space<vmem>>, %arg7: memref<1x128xf32, #tpu.memory_space<vmem>>, %arg8: memref<208x128xf32, #tpu.memory_space<vmem>>) attributes {dimension_semantics = [#tpu.dimension_semantics<parallel>], iteration_bounds = array<i64: 1>, scalar_prefetch = 0 : i64, scratch_operands = 0 : i64, tpu.core_type = #tpu.core_type<tc>, window_params = [{transform_indices = @transform_0, window_bounds = array<i64: 208, 128>}, {pipeline_mode = #tpu.pipeline_mode<synchronous>, transform_indices = @transform_1, window_bounds = array<i64: 128, 128>}, {pipeline_mode = #tpu.pipeline_mode<synchronous>, transform_indices = @transform_2, window_bounds = array<i64: 1, 128>}, {pipeline_mode = #tpu.pipeline_mode<synchronous>, transform_indices = @transform_3, window_bounds = array<i64: 128, 128>}, {pipeline_mode = #tpu.pipeline_mode<synchronous>, transform_indices = @transform_4, window_bounds = array<i64: 1, 128>}, {pipeline_mode = #tpu.pipeline_mode<synchronous>, transform_indices = @transform_5, window_bounds = array<i64: 128, 128>}, {pipeline_mode = #tpu.pipeline_mode<synchronous>, transform_indices = @transform_6, window_bounds = array<i64: 1, 128>}, {transform_indices = @transform_7, window_bounds = array<i64: 208, 128>}]} {
    %c0 = arith.constant 0 : index
    %c0_0 = arith.constant 0 : index
    %0 = vector.load %arg1[%c0, %c0_0] : memref<208x128xf32, #tpu.memory_space<vmem>>, vector<208x128xf32>
    %c0_1 = arith.constant 0 : index
    %c0_2 = arith.constant 0 : index
    %1 = vector.load %arg2[%c0_1, %c0_2] : memref<128x128xf32, #tpu.memory_space<vmem>>, vector<128x128xf32>
    %cst = arith.constant dense<0.000000e+00> : vector<208x128xf32>
    %2 = tpu.matmul %0, %1, %cst {dimension_numbers = #tpu.dot_dimension_numbers<[1], [0], [0], [1], [0, 0, 1, 1], [], []>} : vector<208x128xf32>, vector<128x128xf32>, vector<208x128xf32> -> vector<208x128xf32>
    %c0_3 = arith.constant 0 : index
    %c0_4 = arith.constant 0 : index
    %3 = vector.load %arg3[%c0_3, %c0_4] : memref<1x128xf32, #tpu.memory_space<vmem>>, vector<1x128xf32>
    %4 = vector.broadcast %3 : vector<1x128xf32> to vector<208x128xf32>
    %5 = arith.addf %2, %4 : vector<208x128xf32>
    %cst_5 = arith.constant 0.000000e+00 : f32
    %6 = vector.broadcast %cst_5 : f32 to vector<208x128xf32>
    %7 = arith.maximumf %5, %6 : vector<208x128xf32>
    %c0_6 = arith.constant 0 : index
    %c0_7 = arith.constant 0 : index
    %8 = vector.load %arg4[%c0_6, %c0_7] : memref<128x128xf32, #tpu.memory_space<vmem>>, vector<128x128xf32>
    %cst_8 = arith.constant dense<0.000000e+00> : vector<208x128xf32>
    %9 = tpu.matmul %7, %8, %cst_8 {dimension_numbers = #tpu.dot_dimension_numbers<[1], [0], [0], [1], [0, 0, 1, 1], [], []>} : vector<208x128xf32>, vector<128x128xf32>, vector<208x128xf32> -> vector<208x128xf32>
    %c0_9 = arith.constant 0 : index
    %c0_10 = arith.constant 0 : index
    %10 = vector.load %arg5[%c0_9, %c0_10] : memref<1x128xf32, #tpu.memory_space<vmem>>, vector<1x128xf32>
    %11 = vector.broadcast %10 : vector<1x128xf32> to vector<208x128xf32>
    %12 = arith.addf %9, %11 : vector<208x128xf32>
    %c0_11 = arith.constant 0 : index
    %c0_12 = arith.constant 0 : index
    %13 = vector.load %arg6[%c0_11, %c0_12] : memref<128x128xf32, #tpu.memory_space<vmem>>, vector<128x128xf32>
    %cst_13 = arith.constant dense<0.000000e+00> : vector<208x128xf32>
    %14 = tpu.matmul %12, %13, %cst_13 {dimension_numbers = #tpu.dot_dimension_numbers<[1], [0], [0], [1], [0, 0, 1, 1], [], []>} : vector<208x128xf32>, vector<128x128xf32>, vector<208x128xf32> -> vector<208x128xf32>
    %c0_14 = arith.constant 0 : index
    %c0_15 = arith.constant 0 : index
    %15 = vector.load %arg7[%c0_14, %c0_15] : memref<1x128xf32, #tpu.memory_space<vmem>>, vector<1x128xf32>
    %16 = vector.broadcast %15 : vector<1x128xf32> to vector<208x128xf32>
    %17 = arith.addf %14, %16 : vector<208x128xf32>
    %c0_16 = arith.constant 0 : index
    %c0_17 = arith.constant 0 : index
    %18 = vector.load %arg8[%c0_16, %c0_17] : memref<208x128xf32, #tpu.memory_space<vmem>>, vector<208x128xf32>
    tpu.vector_store %arg8[%c0_16, %c0_17], %17 {strides = array<i32>} : memref<208x128xf32, #tpu.memory_space<vmem>>, vector<208x128xf32>,
    return
  }
  func.func @transform_0(%arg0: i32) -> (i32, i32) {
    %c0_i32 = arith.constant 0 : i32
    %c0_i32_0 = arith.constant 0 : i32
    return %arg0, %c0_i32 : i32, i32
  }
  func.func @transform_1(%arg0: i32) -> (i32, i32) {
    %c0_i32 = arith.constant 0 : i32
    %c0_i32_0 = arith.constant 0 : i32
    %c0_i32_1 = arith.constant 0 : i32
    return %c0_i32, %c0_i32_0 : i32, i32
  }
  func.func @transform_2(%arg0: i32) -> (i32, i32) {
    %c0_i32 = arith.constant 0 : i32
    %c0_i32_0 = arith.constant 0 : i32
    %c0_i32_1 = arith.constant 0 : i32
    return %c0_i32, %c0_i32_0 : i32, i32
  }
  func.func @transform_3(%arg0: i32) -> (i32, i32) {
    %c0_i32 = arith.constant 0 : i32
    %c0_i32_0 = arith.constant 0 : i32
    %c0_i32_1 = arith.constant 0 : i32
    return %c0_i32, %c0_i32_0 : i32, i32
  }
  func.func @transform_4(%arg0: i32) -> (i32, i32) {
    %c0_i32 = arith.constant 0 : i32
    %c0_i32_0 = arith.constant 0 : i32
    %c0_i32_1 = arith.constant 0 : i32
    return %c0_i32, %c0_i32_0 : i32, i32
  }
  func.func @transform_5(%arg0: i32) -> (i32, i32) {
    %c0_i32 = arith.constant 0 : i32
    %c0_i32_0 = arith.constant 0 : i32
    %c0_i32_1 = arith.constant 0 : i32
    return %c0_i32, %c0_i32_0 : i32, i32
  }
  func.func @transform_6(%arg0: i32) -> (i32, i32) {
    %c0_i32 = arith.constant 0 : i32
    %c0_i32_0 = arith.constant 0 : i32
    %c0_i32_1 = arith.constant 0 : i32
    return %c0_i32, %c0_i32_0 : i32, i32
  }
  func.func @transform_7(%arg0: i32) -> (i32, i32) {
    %c0_i32 = arith.constant 0 : i32
    %c0_i32_0 = arith.constant 0 : i32
    return %arg0, %c0_i32 : i32, i32
  }
}

</mosaic_0001>

<llo_original>
// kernel: tpu_custom_call.1
$region0: #{tpu_custom_call.1}
  #allocation0 [shape = 'u32[]', space=smem, size = 0x4, offset = 0x4, fixed_abs, tag = 'smem constant byte address 0x4 - core index']
  #allocation1 [shape = 'u32[72,128]{1,0:T(1,128)}', space=vmem, size = 0x9000, scoped, tag = 'internal scratch']
  %s0 = inlined_call_operand.hbm [shape: f32[208,128], index: 0, kind: input, shape index: {}]
  %s1 = inlined_call_operand.hbm [shape: f32[128,128], index: 1, kind: input, shape index: {}]
  %s2 = inlined_call_operand.vmem [shape: f32[1,128], index: 2, kind: input, shape index: {}]
  %s3 = inlined_call_operand.hbm [shape: f32[128,128], index: 3, kind: input, shape index: {}]
  %s4 = inlined_call_operand.vmem [shape: f32[1,128], index: 4, kind: input, shape index: {}]
  %s5 = inlined_call_operand.hbm [shape: f32[128,128], index: 5, kind: input, shape index: {}]
  %s6 = inlined_call_operand.vmem [shape: f32[1,128], index: 6, kind: input, shape index: {}]
  %s7 = inlined_call_operand.hbm [shape: f32[208,128], index: 7, kind: output, shape index: {}]
  %s8 = sld [smem:[#allocation0]]
  $region54: #{tpu_custom_call.1} parent=0
    _
  %s10 = ssub.s32 1, %s8
  %s11 = scalar_select 0, %s10, %s8
  $region1: #{tpu_custom_call.1} parent=0
    #allocation2 [shape = 'u8[106496]{0}', space=vmem, size = 0x1a000, scoped, tag = 'input window, operand 0, single buffered']
    #allocation3 [shape = 's32[1]{0}', space=sflag, size = 0x4, scoped, tag = 'scoped memory for tpu_custom_call.1']
    #allocation4 [shape = 's32[1]{0}', space=sflag, size = 0x4, scoped, tag = 'scoped memory for tpu_custom_call.1']
    #allocation5 [shape = 'u8[65536]{0}', space=vmem, size = 0x10000, scoped, tag = 'input window, operand 1, single buffered']
    #allocation6 [shape = 's32[1]{0}', space=sflag, size = 0x4, scoped, tag = 'scoped memory for tpu_custom_call.1']
    #allocation7 [shape = 'u8[65536]{0}', space=vmem, size = 0x10000, scoped, tag = 'input window, operand 3, single buffered']
    #allocation8 [shape = 'u8[65536]{0}', space=vmem, size = 0x10000, scoped, tag = 'input window, operand 5, single buffered']
    #allocation9 [shape = 's32[1]{0}', space=sflag, size = 0x4, scoped, tag = 'scoped memory for tpu_custom_call.1']
    #allocation10 [shape = 'u8[106496]{0}', space=vmem, size = 0x1a000, scoped, tag = 'output window, operand 0, single buffered']
    %12 = vsyncpa [#allocation3], 0
    %13 = vsyncpa [#allocation6], 0
    %14 = vsyncpa [#allocation9], 0
    %15 = vsyncpa [#allocation4], 0
    // Predicated region
    $region2: #{tpu_custom_call.1} parent=1 // pred_check
      _
    $region3: #{tpu_custom_call.1} parent=1 // pred_check_branch
      %17 = sbr.rel (0) target = $region5
    $region4: #{tpu_custom_call.1} parent=1 // pred_region
      %19 = vsyncadd [#allocation3], 0
      %s20 = sshll.u32 %s0, 4
      %s21 = int_to_ptr.hbm [resolvable:$true] %s20
      %s22 = sshll.u32 [#allocation2], 4
      %s23 = int_to_ptr.vmem [resolvable:$true] %s22
      %28 = dma.hbm_to_vmem [thread:$0]  %s21, 3328, %s23, [#allocation3], 128, 128, 8
    $region5: #{tpu_custom_call.1} parent=1 // pred_fallthru
      _
    // Predicated region
    $region6: #{tpu_custom_call.1} parent=1 // pred_check
      _
    $region7: #{tpu_custom_call.1} parent=1 // pred_check_branch
      %30 = sbr.rel (0) target = $region9
    $region8: #{tpu_custom_call.1} parent=1 // pred_region
      %32 = vsyncadd [#allocation6], 0
      %s33 = sshll.u32 %s1, 4
      %s34 = int_to_ptr.hbm [resolvable:$true] %s33
      %s35 = sshll.u32 [#allocation5], 4
      %s36 = int_to_ptr.vmem [resolvable:$true] %s35
      %41 = dma.hbm_to_vmem [thread:$0]  %s34, 2048, %s36, [#allocation6], 128, 128, 8
    $region9: #{tpu_custom_call.1} parent=1 // pred_fallthru
      _
    // Predicated region
    $region10: #{tpu_custom_call.1} parent=1 // pred_check
      _
    $region11: #{tpu_custom_call.1} parent=1 // pred_check_branch
      %43 = sbr.rel (0) target = $region13
    $region12: #{tpu_custom_call.1} parent=1 // pred_region
      _
    $region13: #{tpu_custom_call.1} parent=1 // pred_fallthru
      _
    // Predicated region
    $region14: #{tpu_custom_call.1} parent=1 // pred_check
      _
    $region15: #{tpu_custom_call.1} parent=1 // pred_check_branch
      %45 = sbr.rel (0) target = $region17
    $region16: #{tpu_custom_call.1} parent=1 // pred_region
      %47 = vsyncadd [#allocation6], 0
      %s48 = sshll.u32 %s3, 4
      %s49 = int_to_ptr.hbm [resolvable:$true] %s48
      %s50 = sshll.u32 [#allocation7], 4
      %s51 = int_to_ptr.vmem [resolvable:$true] %s50
      %56 = dma.hbm_to_vmem [thread:$0]  %s49, 2048, %s51, [#allocation6], 128, 128, 8
    $region17: #{tpu_custom_call.1} parent=1 // pred_fallthru
      _
    // Predicated region
    $region18: #{tpu_custom_call.1} parent=1 // pred_check
      _
    $region19: #{tpu_custom_call.1} parent=1 // pred_check_branch
      %58 = sbr.rel (0) target = $region21
    $region20: #{tpu_custom_call.1} parent=1 // pred_region
      _
    $region21: #{tpu_custom_call.1} parent=1 // pred_fallthru
      _
    // Predicated region
    $region22: #{tpu_custom_call.1} parent=1 // pred_check
      _
    $region23: #{tpu_custom_call.1} parent=1 // pred_check_branch
      %60 = sbr.rel (0) target = $region25
    $region24: #{tpu_custom_call.1} parent=1 // pred_region
      %62 = vsyncadd [#allocation9], 0
      %s63 = sshll.u32 %s5, 4
      %s64 = int_to_ptr.hbm [resolvable:$true] %s63
      %s65 = sshll.u32 [#allocation8], 4
      %s66 = int_to_ptr.vmem [resolvable:$true] %s65
      %71 = dma.hbm_to_vmem [thread:$0]  %s64, 2048, %s66, [#allocation9], 128, 128, 8
    $region25: #{tpu_custom_call.1} parent=1 // pred_fallthru
      _
    // Predicated region
    $region26: #{tpu_custom_call.1} parent=1 // pred_check
      _
    $region27: #{tpu_custom_call.1} parent=1 // pred_check_branch
      %73 = sbr.rel (0) target = $region29
    $region28: #{tpu_custom_call.1} parent=1 // pred_region
      _
    $region29: #{tpu_custom_call.1} parent=1 // pred_fallthru
      _
    // Predicated region
    $region30: #{tpu_custom_call.1} parent=1 // pred_check
      _
    $region31: #{tpu_custom_call.1} parent=1 // pred_check_branch
      %75 = sbr.rel (0) target = $region33
    $region32: #{tpu_custom_call.1} parent=1 // pred_region
      %77 = dma.done [#allocation3], 3328
    $region33: #{tpu_custom_call.1} parent=1 // pred_fallthru
      _
    // Predicated region
    $region34: #{tpu_custom_call.1} parent=1 // pred_check
      _
    $region35: #{tpu_custom_call.1} parent=1 // pred_check_branch
      %79 = sbr.rel (0) target = $region37
    $region36: #{tpu_custom_call.1} parent=1 // pred_region
      %81 = dma.done [#allocation6], 2048
    $region37: #{tpu_custom_call.1} parent=1 // pred_fallthru
      _
    // Predicated region
    $region38: #{tpu_custom_call.1} parent=1 // pred_check
      _
    $region39: #{tpu_custom_call.1} parent=1 // pred_check_branch
      %83 = sbr.rel (0) target = $region41
    $region40: #{tpu_custom_call.1} parent=1 // pred_region
      %85 = dma.done [#allocation6], 2048
    $region41: #{tpu_custom_call.1} parent=1 // pred_fallthru
      _
    // Predicated region
    $region42: #{tpu_custom_call.1} parent=1 // pred_check
      _
    $region43: #{tpu_custom_call.1} parent=1 // pred_check_branch
      %87 = sbr.rel (0) target = $region45
    $region44: #{tpu_custom_call.1} parent=1 // pred_region
      %89 = dma.done [#allocation9], 2048
    $region45: #{tpu_custom_call.1} parent=1 // pred_fallthru
      _
    %v90 = vld [vmem:[#allocation2] sm:$0xff]
    %v91 = vld [vmem:[#allocation2 + $0x8] sm:$0xff]
    %v92 = vld [vmem:[#allocation2 + $0x10] sm:$0xff]
    %v93 = vld [vmem:[#allocation2 + $0x18] sm:$0xff]
    %v94 = vld [vmem:[#allocation2 + $0x20] sm:$0xff]
    %v95 = vld [vmem:[#allocation2 + $0x28] sm:$0xff]
    %v96 = vld [vmem:[#allocation2 + $0x30] sm:$0xff]
    %v97 = vld [vmem:[#allocation2 + $0x38] sm:$0xff]
    %v98 = vld [vmem:[#allocation2 + $0x40] sm:$0xff]
    %v99 = vld [vmem:[#allocation2 + $0x48] sm:$0xff]
    %v100 = vld [vmem:[#allocation2 + $0x50] sm:$0xff]
    %v101 = vld [vmem:[#allocation2 + $0x58] sm:$0xff]
    %v102 = vld [vmem:[#allocation2 + $0x60] sm:$0xff]
    %v103 = vld [vmem:[#allocation2 + $0x68] sm:$0xff]
    %v104 = vld [vmem:[#allocation2 + $0x70] sm:$0xff]
    %v105 = vld [vmem:[#allocation2 + $0x78] sm:$0xff]
    %v106 = vld [vmem:[#allocation2 + $0x80] sm:$0xff]
    %v107 = vld [vmem:[#allocation2 + $0x88] sm:$0xff]
    %v108 = vld [vmem:[#allocation2 + $0x90] sm:$0xff]
    %v109 = vld [vmem:[#allocation2 + $0x98] sm:$0xff]
    %v110 = vld [vmem:[#allocation2 + $0xa0] sm:$0xff]
    %v111 = vld [vmem:[#allocation2 + $0xa8] sm:$0xff]
    %v112 = vld [vmem:[#allocation2 + $0xb0] sm:$0xff]
    %v113 = vld [vmem:[#allocation2 + $0xb8] sm:$0xff]
    %v114 = vld [vmem:[#allocation2 + $0xc0] sm:$0xff]
    %v115 = vld [vmem:[#allocation2 + $0xc8] sm:$0xff]
    %v116 = vld [vmem:[#allocation5] sm:$0xff]
    %v117 = vld [vmem:[#allocation5 + $0x8] sm:$0xff]
    %v118 = vld [vmem:[#allocation5 + $0x10] sm:$0xff]
    %v119 = vld [vmem:[#allocation5 + $0x18] sm:$0xff]
    %v120 = vld [vmem:[#allocation5 + $0x20] sm:$0xff]
    %v121 = vld [vmem:[#allocation5 + $0x28] sm:$0xff]
    %v122 = vld [vmem:[#allocation5 + $0x30] sm:$0xff]
    %v123 = vld [vmem:[#allocation5 + $0x38] sm:$0xff]
    %v124 = vld [vmem:[#allocation5 + $0x40] sm:$0xff]
    %v125 = vld [vmem:[#allocation5 + $0x48] sm:$0xff]
    %v126 = vld [vmem:[#allocation5 + $0x50] sm:$0xff]
    %v127 = vld [vmem:[#allocation5 + $0x58] sm:$0xff]
    %v128 = vld [vmem:[#allocation5 + $0x60] sm:$0xff]
    %v129 = vld [vmem:[#allocation5 + $0x68] sm:$0xff]
    %v130 = vld [vmem:[#allocation5 + $0x70] sm:$0xff]
    %v131 = vld [vmem:[#allocation5 + $0x78] sm:$0xff]
    %v132 = vld [vmem:[%s2] sm:$0x1]
    %v134 = vperm.slane %v132, 0
    %136 = vmatpush.msra.mxu0 %v131
    %137 = vmatpush.msra.mxu0 %v130
    %138 = vmatpush.msra.mxu0 %v129
    %139 = vmatpush.msra.mxu0 %v128
    %140 = vmatpush.msra.mxu0 %v127
    %141 = vmatpush.msra.mxu0 %v126
    %142 = vmatpush.msra.mxu0 %v125
    %143 = vmatpush.msra.mxu0 %v124
    %144 = vmatpush.msra.mxu0 %v123
    %145 = vmatpush.msra.mxu0 %v122
    %146 = vmatpush.msra.mxu0 %v121
    %147 = vmatpush.msra.mxu0 %v120
    %148 = vmatpush.msra.mxu0 %v119
    %149 = vmatpush.msra.mxu0 %v118
    %150 = vmatpush.msra.mxu0 %v117
    %151 = vmatpush.msra.mxu0 %v116
    %152 = vmatmul.f32.gmra.mxu0 %v90
    %v153 = vpop.f32.mrf.mxu0
    %v154 = vadd.f32 %v134, %v153
    %155 = vmatmul.f32.gmra.mxu0 %v91
    %v156 = vpop.f32.mrf.mxu0
    %v157 = vadd.f32 %v134, %v156
    %158 = vmatmul.f32.gmra.mxu0 %v92
    %v159 = vpop.f32.mrf.mxu0
    %v160 = vadd.f32 %v134, %v159
    %161 = vmatmul.f32.gmra.mxu0 %v93
    %v162 = vpop.f32.mrf.mxu0
    %v163 = vadd.f32 %v134, %v162
    %164 = vmatmul.f32.gmra.mxu0 %v94
    %v165 = vpop.f32.mrf.mxu0
    %v166 = vadd.f32 %v134, %v165
    %167 = vmatmul.f32.gmra.mxu0 %v95
    %v168 = vpop.f32.mrf.mxu0
    %v169 = vadd.f32 %v134, %v168
    %170 = vmatmul.f32.gmra.mxu0 %v96
    %v171 = vpop.f32.mrf.mxu0
    %v172 = vadd.f32 %v134, %v171
    %173 = vmatmul.f32.gmra.mxu0 %v97
    %v174 = vpop.f32.mrf.mxu0
    %v175 = vadd.f32 %v134, %v174
    %176 = vmatmul.f32.gmra.mxu0 %v98
    %v177 = vpop.f32.mrf.mxu0
    %v178 = vadd.f32 %v134, %v177
    %179 = vmatmul.f32.gmra.mxu0 %v99
    %v180 = vpop.f32.mrf.mxu0
    %v181 = vadd.f32 %v134, %v180
    %182 = vmatmul.f32.gmra.mxu0 %v100
    %v183 = vpop.f32.mrf.mxu0
    %v184 = vadd.f32 %v134, %v183
    %185 = vmatmul.f32.gmra.mxu0 %v101
    %v186 = vpop.f32.mrf.mxu0
    %v187 = vadd.f32 %v134, %v186
    %188 = vmatmul.f32.gmra.mxu0 %v102
    %v189 = vpop.f32.mrf.mxu0
    %v190 = vadd.f32 %v134, %v189
    %191 = vmatmul.f32.gmra.mxu0 %v103
    %v192 = vpop.f32.mrf.mxu0
    %v193 = vadd.f32 %v134, %v192
    %194 = vmatmul.f32.gmra.mxu0 %v104
    %v195 = vpop.f32.mrf.mxu0
    %v196 = vadd.f32 %v134, %v195
    %197 = vmatmul.f32.gmra.mxu0 %v105
    %v198 = vpop.f32.mrf.mxu0
    %v199 = vadd.f32 %v134, %v198
    %200 = vmatmul.f32.gmra.mxu0 %v106
    %v201 = vpop.f32.mrf.mxu0
    %v202 = vadd.f32 %v134, %v201
    %203 = vmatmul.f32.gmra.mxu0 %v107
    %v204 = vpop.f32.mrf.mxu0
    %v205 = vadd.f32 %v134, %v204
    %206 = vmatmul.f32.gmra.mxu0 %v108
    %v207 = vpop.f32.mrf.mxu0
    %v208 = vadd.f32 %v134, %v207
    %209 = vmatmul.f32.gmra.mxu0 %v109
    %v210 = vpop.f32.mrf.mxu0
    %v211 = vadd.f32 %v134, %v210
    %212 = vmatmul.f32.gmra.mxu0 %v110
    %v213 = vpop.f32.mrf.mxu0
    %v214 = vadd.f32 %v134, %v213
    %215 = vmatmul.f32.gmra.mxu0 %v111
    %v216 = vpop.f32.mrf.mxu0
    %v217 = vadd.f32 %v134, %v216
    %218 = vmatmul.f32.gmra.mxu0 %v112
    %v219 = vpop.f32.mrf.mxu0
    %v220 = vadd.f32 %v134, %v219
    %221 = vmatmul.f32.gmra.mxu0 %v113
    %v222 = vpop.f32.mrf.mxu0
    %v223 = vadd.f32 %v134, %v222
    %224 = vmatmul.f32.gmra.mxu0 %v114
    %v225 = vpop.f32.mrf.mxu0
    %v226 = vadd.f32 %v134, %v225
    %227 = vmatmul.f32.gmra.mxu0 %v115
    %v228 = vpop.f32.mrf.mxu0
    %v229 = vadd.f32 %v134, %v228
    %230 = vdwg.mxu0
    %v231 = vmax.f32 %v154, 0.0
    %v232 = vmax.f32 %v157, 0.0
    %v233 = vmax.f32 %v160, 0.0
    %v234 = vmax.f32 %v163, 0.0
    %v235 = vmax.f32 %v166, 0.0
    %v236 = vmax.f32 %v169, 0.0
    %v237 = vmax.f32 %v172, 0.0
    %v238 = vmax.f32 %v175, 0.0
    %v239 = vmax.f32 %v178, 0.0
    %v240 = vmax.f32 %v181, 0.0
    %v241 = vmax.f32 %v184, 0.0
    %v242 = vmax.f32 %v187, 0.0
    %v243 = vmax.f32 %v190, 0.0
    %v244 = vmax.f32 %v193, 0.0
    %v245 = vmax.f32 %v196, 0.0
    %v246 = vmax.f32 %v199, 0.0
    %v247 = vmax.f32 %v202, 0.0
    %v248 = vmax.f32 %v205, 0.0
    %v249 = vmax.f32 %v208, 0.0
    %v250 = vmax.f32 %v211, 0.0
    %v251 = vmax.f32 %v214, 0.0
    %v252 = vmax.f32 %v217, 0.0
    %v253 = vmax.f32 %v220, 0.0
    %v254 = vmax.f32 %v223, 0.0
    %v255 = vmax.f32 %v226, 0.0
    %v256 = vmax.f32 %v229, 0.0
    %v257 = vld [vmem:[#allocation7] sm:$0xff]
    %v258 = vld [vmem:[#allocation7 + $0x8] sm:$0xff]
    %v259 = vld [vmem:[#allocation7 + $0x10] sm:$0xff]
    %v260 = vld [vmem:[#allocation7 + $0x18] sm:$0xff]
    %v261 = vld [vmem:[#allocation7 + $0x20] sm:$0xff]
    %v262 = vld [vmem:[#allocation7 + $0x28] sm:$0xff]
    %v263 = vld [vmem:[#allocation7 + $0x30] sm:$0xff]
    %v264 = vld [vmem:[#allocation7 + $0x38] sm:$0xff]
    %v265 = vld [vmem:[#allocation7 + $0x40] sm:$0xff]
    %v266 = vld [vmem:[#allocation7 + $0x48] sm:$0xff]
    %v267 = vld [vmem:[#allocation7 + $0x50] sm:$0xff]
    %v268 = vld [vmem:[#allocation7 + $0x58] sm:$0xff]
    %v269 = vld [vmem:[#allocation7 + $0x60] sm:$0xff]
    %v270 = vld [vmem:[#allocation7 + $0x68] sm:$0xff]
    %v271 = vld [vmem:[#allocation7 + $0x70] sm:$0xff]
    %v272 = vld [vmem:[#allocation7 + $0x78] sm:$0xff]
    %v273 = vld [vmem:[%s4] sm:$0x1]
    %v275 = vperm.slane %v273, 0
    %277 = vmatpush.msra.mxu0 %v272
    %278 = vmatpush.msra.mxu0 %v271
    %279 = vmatpush.msra.mxu0 %v270
    %280 = vmatpush.msra.mxu0 %v269
    %281 = vmatpush.msra.mxu0 %v268
    %282 = vmatpush.msra.mxu0 %v267
    %283 = vmatpush.msra.mxu0 %v266
    %284 = vmatpush.msra.mxu0 %v265
    %285 = vmatpush.msra.mxu0 %v264
    %286 = vmatpush.msra.mxu0 %v263
    %287 = vmatpush.msra.mxu0 %v262
    %288 = vmatpush.msra.mxu0 %v261
    %289 = vmatpush.msra.mxu0 %v260
    %290 = vmatpush.msra.mxu0 %v259
    %291 = vmatpush.msra.mxu0 %v258
    %292 = vmatpush.msra.mxu0 %v257
    %293 = vmatmul.f32.gmra.mxu0 %v231
    %v294 = vpop.f32.mrf.mxu0
    %v295 = vadd.f32 %v275, %v294
    %296 = vmatmul.f32.gmra.mxu0 %v232
    %v297 = vpop.f32.mrf.mxu0
    %v298 = vadd.f32 %v275, %v297
    %299 = vmatmul.f32.gmra.mxu0 %v233
    %v300 = vpop.f32.mrf.mxu0
    %v301 = vadd.f32 %v275, %v300
    %302 = vmatmul.f32.gmra.mxu0 %v234
    %v303 = vpop.f32.mrf.mxu0
    %v304 = vadd.f32 %v275, %v303
    %305 = vmatmul.f32.gmra.mxu0 %v235
    %v306 = vpop.f32.mrf.mxu0
    %v307 = vadd.f32 %v275, %v306
    %308 = vmatmul.f32.gmra.mxu0 %v236
    %v309 = vpop.f32.mrf.mxu0
    %v310 = vadd.f32 %v275, %v309
    %311 = vmatmul.f32.gmra.mxu0 %v237
    %v312 = vpop.f32.mrf.mxu0
    %v313 = vadd.f32 %v275, %v312
    %314 = vmatmul.f32.gmra.mxu0 %v238
    %v315 = vpop.f32.mrf.mxu0
    %v316 = vadd.f32 %v275, %v315
    %317 = vmatmul.f32.gmra.mxu0 %v239
    %v318 = vpop.f32.mrf.mxu0
    %v319 = vadd.f32 %v275, %v318
    %320 = vmatmul.f32.gmra.mxu0 %v240
    %v321 = vpop.f32.mrf.mxu0
    %v322 = vadd.f32 %v275, %v321
    %323 = vmatmul.f32.gmra.mxu0 %v241
    %v324 = vpop.f32.mrf.mxu0
    %v325 = vadd.f32 %v275, %v324
    %326 = vmatmul.f32.gmra.mxu0 %v242
    %v327 = vpop.f32.mrf.mxu0
    %v328 = vadd.f32 %v275, %v327
    %329 = vmatmul.f32.gmra.mxu0 %v243
    %v330 = vpop.f32.mrf.mxu0
    %v331 = vadd.f32 %v275, %v330
    %332 = vmatmul.f32.gmra.mxu0 %v244
    %v333 = vpop.f32.mrf.mxu0
    %v334 = vadd.f32 %v275, %v333
    %335 = vmatmul.f32.gmra.mxu0 %v245
    %v336 = vpop.f32.mrf.mxu0
    %v337 = vadd.f32 %v275, %v336
    %338 = vmatmul.f32.gmra.mxu0 %v246
    %v339 = vpop.f32.mrf.mxu0
    %v340 = vadd.f32 %v275, %v339
    %341 = vmatmul.f32.gmra.mxu0 %v247
    %v342 = vpop.f32.mrf.mxu0
    %v343 = vadd.f32 %v275, %v342
    %344 = vmatmul.f32.gmra.mxu0 %v248
    %v345 = vpop.f32.mrf.mxu0
    %v346 = vadd.f32 %v275, %v345
    %347 = vmatmul.f32.gmra.mxu0 %v249
    %v348 = vpop.f32.mrf.mxu0
    %v349 = vadd.f32 %v275, %v348
    %350 = vmatmul.f32.gmra.mxu0 %v250
    %v351 = vpop.f32.mrf.mxu0
    %v352 = vadd.f32 %v275, %v351
    %353 = vmatmul.f32.gmra.mxu0 %v251
    %v354 = vpop.f32.mrf.mxu0
    %v355 = vadd.f32 %v275, %v354
    %356 = vmatmul.f32.gmra.mxu0 %v252
    %v357 = vpop.f32.mrf.mxu0
    %v358 = vadd.f32 %v275, %v357
    %359 = vmatmul.f32.gmra.mxu0 %v253
    %v360 = vpop.f32.mrf.mxu0
    %v361 = vadd.f32 %v275, %v360
    %362 = vmatmul.f32.gmra.mxu0 %v254
    %v363 = vpop.f32.mrf.mxu0
    %v364 = vadd.f32 %v275, %v363
    %365 = vmatmul.f32.gmra.mxu0 %v255
    %v366 = vpop.f32.mrf.mxu0
    %v367 = vadd.f32 %v275, %v366
    %368 = vmatmul.f32.gmra.mxu0 %v256
    %v369 = vpop.f32.mrf.mxu0
    %v370 = vadd.f32 %v275, %v369
    %371 = vdwg.mxu0
    %v372 = vld [vmem:[#allocation8] sm:$0xff]
    %v373 = vld [vmem:[#allocation8 + $0x8] sm:$0xff]
    %v374 = vld [vmem:[#allocation8 + $0x10] sm:$0xff]
    %v375 = vld [vmem:[#allocation8 + $0x18] sm:$0xff]
    %v376 = vld [vmem:[#allocation8 + $0x20] sm:$0xff]
    %v377 = vld [vmem:[#allocation8 + $0x28] sm:$0xff]
    %v378 = vld [vmem:[#allocation8 + $0x30] sm:$0xff]
    %v379 = vld [vmem:[#allocation8 + $0x38] sm:$0xff]
    %v380 = vld [vmem:[#allocation8 + $0x40] sm:$0xff]
    %v381 = vld [vmem:[#allocation8 + $0x48] sm:$0xff]
    %v382 = vld [vmem:[#allocation8 + $0x50] sm:$0xff]
    %v383 = vld [vmem:[#allocation8 + $0x58] sm:$0xff]
    %v384 = vld [vmem:[#allocation8 + $0x60] sm:$0xff]
    %v385 = vld [vmem:[#allocation8 + $0x68] sm:$0xff]
    %v386 = vld [vmem:[#allocation8 + $0x70] sm:$0xff]
    %v387 = vld [vmem:[#allocation8 + $0x78] sm:$0xff]
    %v388 = vld [vmem:[%s6] sm:$0x1]
    %v390 = vperm.slane %v388, 0
    %392 = vmatpush.msra.mxu0 %v387
    %393 = vmatpush.msra.mxu0 %v386
    %394 = vmatpush.msra.mxu0 %v385
    %395 = vmatpush.msra.mxu0 %v384
    %396 = vmatpush.msra.mxu0 %v383
    %397 = vmatpush.msra.mxu0 %v382
    %398 = vmatpush.msra.mxu0 %v381
    %399 = vmatpush.msra.mxu0 %v380
    %400 = vmatpush.msra.mxu0 %v379
    %401 = vmatpush.msra.mxu0 %v378
    %402 = vmatpush.msra.mxu0 %v377
    %403 = vmatpush.msra.mxu0 %v376
    %404 = vmatpush.msra.mxu0 %v375
    %405 = vmatpush.msra.mxu0 %v374
    %406 = vmatpush.msra.mxu0 %v373
    %407 = vmatpush.msra.mxu0 %v372
    %408 = vmatmul.f32.gmra.mxu0 %v295
    %v409 = vpop.f32.mrf.mxu0
    %v410 = vadd.f32 %v390, %v409
    %411 = vmatmul.f32.gmra.mxu0 %v298
    %v412 = vpop.f32.mrf.mxu0
    %v413 = vadd.f32 %v390, %v412
    %414 = vmatmul.f32.gmra.mxu0 %v301
    %v415 = vpop.f32.mrf.mxu0
    %v416 = vadd.f32 %v390, %v415
    %417 = vmatmul.f32.gmra.mxu0 %v304
    %v418 = vpop.f32.mrf.mxu0
    %v419 = vadd.f32 %v390, %v418
    %420 = vmatmul.f32.gmra.mxu0 %v307
    %v421 = vpop.f32.mrf.mxu0
    %v422 = vadd.f32 %v390, %v421
    %423 = vmatmul.f32.gmra.mxu0 %v310
    %v424 = vpop.f32.mrf.mxu0
    %v425 = vadd.f32 %v390, %v424
    %426 = vmatmul.f32.gmra.mxu0 %v313
    %v427 = vpop.f32.mrf.mxu0
    %v428 = vadd.f32 %v390, %v427
    %429 = vmatmul.f32.gmra.mxu0 %v316
    %v430 = vpop.f32.mrf.mxu0
    %v431 = vadd.f32 %v390, %v430
    %432 = vmatmul.f32.gmra.mxu0 %v319
    %v433 = vpop.f32.mrf.mxu0
    %v434 = vadd.f32 %v390, %v433
    %435 = vmatmul.f32.gmra.mxu0 %v322
    %v436 = vpop.f32.mrf.mxu0
    %v437 = vadd.f32 %v390, %v436
    %438 = vmatmul.f32.gmra.mxu0 %v325
    %v439 = vpop.f32.mrf.mxu0
    %v440 = vadd.f32 %v390, %v439
    %441 = vmatmul.f32.gmra.mxu0 %v328
    %v442 = vpop.f32.mrf.mxu0
    %v443 = vadd.f32 %v390, %v442
    %444 = vmatmul.f32.gmra.mxu0 %v331
    %v445 = vpop.f32.mrf.mxu0
    %v446 = vadd.f32 %v390, %v445
    %447 = vmatmul.f32.gmra.mxu0 %v334
    %v448 = vpop.f32.mrf.mxu0
    %v449 = vadd.f32 %v390, %v448
    %450 = vmatmul.f32.gmra.mxu0 %v337
    %v451 = vpop.f32.mrf.mxu0
    %v452 = vadd.f32 %v390, %v451
    %453 = vmatmul.f32.gmra.mxu0 %v340
    %v454 = vpop.f32.mrf.mxu0
    %v455 = vadd.f32 %v390, %v454
    %456 = vmatmul.f32.gmra.mxu0 %v343
    %v457 = vpop.f32.mrf.mxu0
    %v458 = vadd.f32 %v390, %v457
    %459 = vmatmul.f32.gmra.mxu0 %v346
    %v460 = vpop.f32.mrf.mxu0
    %v461 = vadd.f32 %v390, %v460
    %462 = vmatmul.f32.gmra.mxu0 %v349
    %v463 = vpop.f32.mrf.mxu0
    %v464 = vadd.f32 %v390, %v463
    %465 = vmatmul.f32.gmra.mxu0 %v352
    %v466 = vpop.f32.mrf.mxu0
    %v467 = vadd.f32 %v390, %v466
    %468 = vmatmul.f32.gmra.mxu0 %v355
    %v469 = vpop.f32.mrf.mxu0
    %v470 = vadd.f32 %v390, %v469
    %471 = vmatmul.f32.gmra.mxu0 %v358
    %v472 = vpop.f32.mrf.mxu0
    %v473 = vadd.f32 %v390, %v472
    %474 = vmatmul.f32.gmra.mxu0 %v361
    %v475 = vpop.f32.mrf.mxu0
    %v476 = vadd.f32 %v390, %v475
    %477 = vmatmul.f32.gmra.mxu0 %v364
    %v478 = vpop.f32.mrf.mxu0
    %v479 = vadd.f32 %v390, %v478
    %480 = vmatmul.f32.gmra.mxu0 %v367
    %v481 = vpop.f32.mrf.mxu0
    %v482 = vadd.f32 %v390, %v481
    %483 = vmatmul.f32.gmra.mxu0 %v370
    %v484 = vpop.f32.mrf.mxu0
    %v485 = vadd.f32 %v390, %v484
    %486 = vdwg.mxu0
    %487 = vst [vmem:[#allocation10] sm:$0xff] %v410
    %488 = vst [vmem:[#allocation10 + $0x8] sm:$0xff] %v413
    %489 = vst [vmem:[#allocation10 + $0x10] sm:$0xff] %v416
    %490 = vst [vmem:[#allocation10 + $0x18] sm:$0xff] %v419
    %491 = vst [vmem:[#allocation10 + $0x20] sm:$0xff] %v422
    %492 = vst [vmem:[#allocation10 + $0x28] sm:$0xff] %v425
    %493 = vst [vmem:[#allocation10 + $0x30] sm:$0xff] %v428
    %494 = vst [vmem:[#allocation10 + $0x38] sm:$0xff] %v431
    %495 = vst [vmem:[#allocation10 + $0x40] sm:$0xff] %v434
    %496 = vst [vmem:[#allocation10 + $0x48] sm:$0xff] %v437
    %497 = vst [vmem:[#allocation10 + $0x50] sm:$0xff] %v440
    %498 = vst [vmem:[#allocation10 + $0x58] sm:$0xff] %v443
    %499 = vst [vmem:[#allocation10 + $0x60] sm:$0xff] %v446
    %500 = vst [vmem:[#allocation10 + $0x68] sm:$0xff] %v449
    %501 = vst [vmem:[#allocation10 + $0x70] sm:$0xff] %v452
    %502 = vst [vmem:[#allocation10 + $0x78] sm:$0xff] %v455
    %503 = vst [vmem:[#allocation10 + $0x80] sm:$0xff] %v458
    %504 = vst [vmem:[#allocation10 + $0x88] sm:$0xff] %v461
    %505 = vst [vmem:[#allocation10 + $0x90] sm:$0xff] %v464
    %506 = vst [vmem:[#allocation10 + $0x98] sm:$0xff] %v467
    %507 = vst [vmem:[#allocation10 + $0xa0] sm:$0xff] %v470
    %508 = vst [vmem:[#allocation10 + $0xa8] sm:$0xff] %v473
    %509 = vst [vmem:[#allocation10 + $0xb0] sm:$0xff] %v476
    %510 = vst [vmem:[#allocation10 + $0xb8] sm:$0xff] %v479
    %511 = vst [vmem:[#allocation10 + $0xc0] sm:$0xff] %v482
    %512 = vst [vmem:[#allocation10 + $0xc8] sm:$0xff] %v485
    // Predicated region
    $region46: #{tpu_custom_call.1} parent=1 // pred_check
      _
    $region47: #{tpu_custom_call.1} parent=1 // pred_check_branch
      %514 = sbr.rel (0) target = $region49
    $region48: #{tpu_custom_call.1} parent=1 // pred_region
      %516 = vsyncadd [#allocation4], 0
      %s517 = sshll.u32 [#allocation10], 4
      %s518 = int_to_ptr.vmem [resolvable:$true] %s517
      %s519 = sshll.u32 %s7, 4
      %s520 = int_to_ptr.hbm [resolvable:$true] %s519
      %525 = dma.vmem_to_hbm [thread:$0]  %s518, 3328, %s520, [#allocation4], 128, 128, 8
    $region49: #{tpu_custom_call.1} parent=1 // pred_fallthru
      _
    // Predicated region
    $region50: #{tpu_custom_call.1} parent=1 // pred_check
      _
    $region51: #{tpu_custom_call.1} parent=1 // pred_check_branch
      %527 = sbr.rel (0) target = $region53
    $region52: #{tpu_custom_call.1} parent=1 // pred_region
      %529 = dma.done [#allocation4], 3328
    $region53: #{tpu_custom_call.1} parent=1 // pred_fallthru
      _
    %530 = vsyncpa [#allocation3], 1
    %531 = vsyncpa [#allocation6], 1
    %532 = vsyncpa [#allocation9], 1
    %533 = vsyncpa [#allocation4], 1

</llo_original>
